<compile_context>
chip_gen: v7x
topology: tpu7x:2x2x1
jax: 0.10.0
libtpu: 0.0.40
codegen_flags: <defaults>
</compile_context>

<pallas_src>
import functools

import jax
import jax.numpy as jnp
from jax.experimental import pallas as pl
from jax.experimental.pallas import tpu as pltpu

_LANE = 128
_VMEM_LIMIT = 48 * 1024 * 1024  # above 16/32 MiB defaults, under v7x's 64 MiB


def _round_up(x, m):
    return ((x + m - 1) // m) * m


def _pad_nodes(n):
    """Padded node count: multiple of 128, and of 512 once we tile (n > 256)."""
    if n <= 256:
        return _round_up(n, _LANE)
    return _round_up(n, 512)


def _node_tiles(n_p):
    """(row tile tm, contraction tile tk) for a padded node count n_p."""
    if n_p <= 256:
        return n_p, n_p
    return 256, 512


# ----------------------------------------------------------------------------
# Kernel 1: support = x @ W   (computed once per layer, row-tiled)
# ----------------------------------------------------------------------------
def _support_kernel(x_ref, w_ref, o_ref):
    o_ref[...] = jnp.dot(
        x_ref[...], w_ref[...], preferred_element_type=jnp.float32
    ).astype(o_ref.dtype)


def _support_matmul(x, w, out_dtype):
    n_p, fin_p = x.shape
    fout_p = w.shape[1]
    tr = n_p if n_p <= 256 else 512
    grid = (n_p // tr,)

    cost = pl.CostEstimate(
        flops=2 * n_p * fin_p * fout_p,
        transcendentals=0,
        bytes_accessed=int(x.size * x.dtype.itemsize
                           + w.size * w.dtype.itemsize
                           + n_p * fout_p * jnp.dtype(out_dtype).itemsize),
    )
    return pl.pallas_call(
        _support_kernel,
        out_shape=jax.ShapeDtypeStruct((n_p, fout_p), out_dtype),
        grid_spec=pltpu.PrefetchScalarGridSpec(
            num_scalar_prefetch=0,
            grid=grid,
            in_specs=[
                pl.BlockSpec((tr, fin_p), lambda i: (i, 0)),      # x row tile
                pl.BlockSpec((fin_p, fout_p), lambda i: (0, 0)),  # full W
            ],
            out_specs=pl.BlockSpec((tr, fout_p), lambda i: (i, 0)),
        ),
        compiler_params=pltpu.CompilerParams(
            dimension_semantics=("parallel",),
            vmem_limit_bytes=_VMEM_LIMIT),
        cost_estimate=cost,
    )(x, w)


# ----------------------------------------------------------------------------
# Kernel 2: out = act(adj @ support + b) [fused dropout]   (i, k grid + acc)
# ----------------------------------------------------------------------------
def _aggregate_kernel(*refs, negative_slope, apply_act, keep_scale, has_mask):
    if has_mask:
        adj_ref, s_ref, b_ref, mask_ref, o_ref, acc_ref = refs
    else:
        adj_ref, s_ref, b_ref, o_ref, acc_ref = refs
        mask_ref = None

    k = pl.program_id(1)

    @pl.when(k == 0)
    def _():
        acc_ref[...] = jnp.zeros_like(acc_ref)

    acc_ref[...] += jnp.dot(adj_ref[...], s_ref[...],
                            preferred_element_type=jnp.float32)

    @pl.when(k == pl.num_programs(1) - 1)
    def _():
        z = acc_ref[...] + b_ref[...]          # (1, fout) bias row broadcast
        if apply_act:
            z = jnp.where(z > 0, z, negative_slope * z)   # LeakyReLU(0.2), VPU
        if has_mask:
            z = z * mask_ref[...] * keep_scale            # fused inverted dropout
        o_ref[...] = z.astype(o_ref.dtype)


def _aggregate(adj, support, bias2, mask, *, apply_act, keep_scale,
               negative_slope, out_dtype):
    n_p = adj.shape[0]
    fout_p = support.shape[1]
    tm, tk = _node_tiles(n_p)
    grid = (n_p // tm, n_p // tk)
    has_mask = mask is not None

    kernel = functools.partial(
        _aggregate_kernel, negative_slope=negative_slope,
        apply_act=apply_act, keep_scale=keep_scale, has_mask=has_mask)

    in_specs = [
        pl.BlockSpec((tm, tk), lambda i, k: (i, k)),      # adj tile (streams)
        pl.BlockSpec((tk, fout_p), lambda i, k: (k, 0)),  # support k-tile
        pl.BlockSpec((1, fout_p), lambda i, k: (0, 0)),   # bias row
    ]
    operands = [adj, support, bias2]
    if has_mask:
        in_specs.append(pl.BlockSpec((tm, fout_p), lambda i, k: (i, 0)))
        operands.append(mask)

    bytes_accessed = sum(int(a.size) * a.dtype.itemsize for a in operands)
    bytes_accessed += n_p * fout_p * jnp.dtype(out_dtype).itemsize
    cost = pl.CostEstimate(flops=2 * n_p * n_p * fout_p, transcendentals=0,
                           bytes_accessed=int(bytes_accessed))

    return pl.pallas_call(
        kernel,
        out_shape=jax.ShapeDtypeStruct((n_p, fout_p), out_dtype),
        grid_spec=pltpu.PrefetchScalarGridSpec(
            num_scalar_prefetch=0,
            grid=grid,
            in_specs=in_specs,
            out_specs=pl.BlockSpec((tm, fout_p), lambda i, k: (i, 0)),
            scratch_shapes=[pltpu.VMEM((tm, fout_p), jnp.float32)],
        ),
        compiler_params=pltpu.CompilerParams(
            dimension_semantics=("parallel", "arbitrary"),
            vmem_limit_bytes=_VMEM_LIMIT),
        cost_estimate=cost,
    )(*operands)


# ----------------------------------------------------------------------------
# One GraphConvolution layer (operates on padded arrays)
# ----------------------------------------------------------------------------
def gcn_layer(x_p, adj_p, w_p, b_p, *, apply_act, mask_p=None, keep_scale=1.0,
              negative_slope=0.2, use_bf16=False):
    compute_dtype = jnp.bfloat16 if use_bf16 else x_p.dtype
    support = _support_matmul(x_p.astype(compute_dtype),
                              w_p.astype(compute_dtype),
                              out_dtype=compute_dtype)
    return _aggregate(
        adj_p.astype(compute_dtype), support,
        b_p.reshape(1, -1).astype(jnp.float32),
        None if mask_p is None else mask_p.astype(jnp.float32),
        apply_act=apply_act, keep_scale=keep_scale,
        negative_slope=negative_slope, out_dtype=x_p.dtype)


# ----------------------------------------------------------------------------
# Full GCN forward (pads once, runs all layers, slices padding off)
# ----------------------------------------------------------------------------
def gcn_forward(x, adj, weights, biases, dropout_p, keep_mask=None,
                use_bf16=False):
    n, fin = x.shape
    n_layers = len(weights)
    fout_final = weights[-1].shape[1]

    channels = [w.shape[0] for w in weights] + [fout_final]
    ch_p = [_round_up(c, _LANE) for c in channels]
    n_p = _pad_nodes(n)

    # Zero-padding: padded adj rows/cols are zero, so padded node rows never
    # contaminate real rows; padded feature cols stay exactly zero layer-to-layer.
    adj_p = jnp.pad(adj, ((0, n_p - n), (0, n_p - n)))
    x_p = jnp.pad(x, ((0, n_p - n), (0, ch_p[0] - channels[0])))
    w_p = [jnp.pad(w, ((0, ch_p[i] - w.shape[0]), (0, ch_p[i + 1] - w.shape[1])))
           for i, w in enumerate(weights)]
    b_p = [jnp.pad(b, (0, ch_p[i + 1] - b.shape[0]))
           for i, b in enumerate(biases)]

    do_dropout = (keep_mask is not None) and dropout_p > 0.0
    keep_scale = 1.0 / (1.0 - dropout_p) if do_dropout else 1.0
    mask_p = None
    if do_dropout:
        mask_p = jnp.pad(keep_mask.astype(jnp.float32),
                         ((0, n_p - keep_mask.shape[0]),
                          (0, ch_p[-2] - keep_mask.shape[1])))

    # Hidden layers (LeakyReLU epilogue).  Dropout is fused into the LAST
    # hidden layer's epilogue -- identical to F.dropout after the activation.
    for i in range(n_layers - 1):
        fuse = do_dropout and (i == n_layers - 2)
        x_p = gcn_layer(x_p, adj_p, w_p[i], b_p[i], apply_act=True,
                        mask_p=mask_p if fuse else None,
                        keep_scale=keep_scale if fuse else 1.0,
                        use_bf16=use_bf16)

    if n_layers == 1 and do_dropout:
        # Degenerate no-hidden-layer case: dropout applies to the raw input.
        x_p = x_p * mask_p.astype(x_p.dtype) * keep_scale

    x_p = gcn_layer(x_p, adj_p, w_p[-1], b_p[-1], apply_act=False,
                    use_bf16=use_bf16)
    return x_p[:n, :fout_final]


# ----------------------------------------------------------------------------
# Pure-JAX reference
# ----------------------------------------------------------------------------
def gcn_forward_ref(x, adj, weights, biases, dropout_p, keep_mask=None):
    for i in range(len(weights) - 1):
        z = adj @ (x @ weights[i]) + biases[i]
        x = jnp.where(z > 0, z, 0.2 * z)
    if keep_mask is not None and dropout_p > 0.0:
        x = x * keep_mask.astype(x.dtype) / (1.0 - dropout_p)
    return adj @ (x @ weights[-1]) + biases[-1]


if __name__ == "__main__":
    # Small shapes consistent with GCN(ninput, nhid, noutput, dropout)
    n_nodes = 16
    ninput = 8
    nhid = [32, 32]
    noutput = 16
    dropout_p = 0.1

    channels = [ninput] + nhid + [noutput]

    key = jax.random.PRNGKey(0)
    key, k_x, k_adj, k_drop = jax.random.split(key, 4)

    # Node features and a row-normalized dense adjacency (stand-in for spmm's adj).
    x = jax.random.normal(k_x, (n_nodes, ninput), dtype=jnp.float32)
    a = jax.random.uniform(k_adj, (n_nodes, n_nodes), dtype=jnp.float32)
    a = (a > 0.5).astype(jnp.float32) + jnp.eye(n_nodes, dtype=jnp.float32)
    adj = a / jnp.sum(a, axis=1, keepdims=True)

    # GraphConvolution params: uniform(-stdv, stdv), stdv = 1/sqrt(out_features)
    weights, biases = [], []
    for cin, cout in zip(channels[:-1], channels[1:]):
        key, kw, kb = jax.random.split(key, 3)
        stdv = 1.0 / (cout ** 0.5)
        weights.append(jax.random.uniform(kw, (cin, cout), jnp.float32, -stdv, stdv))
        biases.append(jax.random.uniform(kb, (cout,), jnp.float32, -stdv, stdv))

    # Deterministic dropout keep-mask (F.dropout runs with training=True here;
    # the mask is host-generated so the Pallas path is exactly reproducible).
    keep_mask = jax.random.bernoulli(
        k_drop, 1.0 - dropout_p, (n_nodes, channels[-2])).astype(jnp.float32)

    out = gcn_forward(x, adj, weights, biases, dropout_p, keep_mask)
    out = jax.block_until_ready(out)

    ref = gcn_forward_ref(x, adj, weights, biases, dropout_p, keep_mask)
    assert out.shape == (n_nodes, noutput)
    assert jnp.allclose(out, ref, atol=1e-5, rtol=1e-5)

    print("KERNEL_OK")
</pallas_src>

<mosaic_0001>
module attributes {stable_mosaic.version = 11 : i64} {
  func.func @_support_kernel(%arg0: i32, %arg1: memref<128x128xf32, #tpu.memory_space<vmem>>, %arg2: memref<128x128xf32, #tpu.memory_space<vmem>>, %arg3: memref<128x128xf32, #tpu.memory_space<vmem>>) attributes {dimension_semantics = [#tpu.dimension_semantics<parallel>], iteration_bounds = array<i64: 1>, scalar_prefetch = 0 : i64, scratch_operands = 0 : i64, tpu.core_type = #tpu.core_type<tc>, window_params = [{transform_indices = @transform_0, window_bounds = array<i64: 128, 128>}, {pipeline_mode = #tpu.pipeline_mode<synchronous>, transform_indices = @transform_1, window_bounds = array<i64: 128, 128>}, {transform_indices = @transform_2, window_bounds = array<i64: 128, 128>}]} {
    %c0 = arith.constant 0 : index
    %c0_0 = arith.constant 0 : index
    %0 = vector.load %arg1[%c0, %c0_0] : memref<128x128xf32, #tpu.memory_space<vmem>>, vector<128x128xf32>
    %c0_1 = arith.constant 0 : index
    %c0_2 = arith.constant 0 : index
    %1 = vector.load %arg2[%c0_1, %c0_2] : memref<128x128xf32, #tpu.memory_space<vmem>>, vector<128x128xf32>
    %cst = arith.constant dense<0.000000e+00> : vector<128x128xf32>
    %2 = tpu.matmul %0, %1, %cst {dimension_numbers = #tpu.dot_dimension_numbers<[1], [0], [0], [1], [0, 0, 1, 1], [], []>} : vector<128x128xf32>, vector<128x128xf32>, vector<128x128xf32> -> vector<128x128xf32>
    %c0_3 = arith.constant 0 : index
    %c0_4 = arith.constant 0 : index
    %3 = vector.load %arg3[%c0_3, %c0_4] : memref<128x128xf32, #tpu.memory_space<vmem>>, vector<128x128xf32>
    tpu.vector_store %arg3[%c0_3, %c0_4], %2 {strides = array<i32>} : memref<128x128xf32, #tpu.memory_space<vmem>>, vector<128x128xf32>,
    return
  }
  func.func @transform_0(%arg0: i32) -> (i32, i32) {
    %c0_i32 = arith.constant 0 : i32
    %c0_i32_0 = arith.constant 0 : i32
    return %arg0, %c0_i32 : i32, i32
  }
  func.func @transform_1(%arg0: i32) -> (i32, i32) {
    %c0_i32 = arith.constant 0 : i32
    %c0_i32_0 = arith.constant 0 : i32
    %c0_i32_1 = arith.constant 0 : i32
    return %c0_i32, %c0_i32_0 : i32, i32
  }
  func.func @transform_2(%arg0: i32) -> (i32, i32) {
    %c0_i32 = arith.constant 0 : i32
    %c0_i32_0 = arith.constant 0 : i32
    return %arg0, %c0_i32 : i32, i32
  }
}

</mosaic_0001>

<llo_original>
// kernel: tpu_custom_call.1
$region0: #{tpu_custom_call.1}
  #allocation0 [shape = 'u32[]', space=smem, size = 0x4, offset = 0x4, fixed_abs, tag = 'smem constant byte address 0x4 - core index']
  #allocation1 [shape = 'u32[144,128]{1,0:T(1,128)}', space=vmem, size = 0x12000, scoped, tag = 'internal scratch']
  %s0 = inlined_call_operand.hbm [shape: f32[128,128], index: 0, kind: input, shape index: {}]
  %s1 = inlined_call_operand.hbm [shape: f32[128,128], index: 1, kind: input, shape index: {}]
  %s2 = inlined_call_operand.hbm [shape: f32[128,128], index: 2, kind: output, shape index: {}]
  %s3 = sld [smem:[#allocation0]]
  $region26: #{tpu_custom_call.1} parent=0
    _
  %s5 = ssub.s32 1, %s3
  %s6 = scalar_select 0, %s5, %s3
  $region1: #{tpu_custom_call.1} parent=0
    #allocation2 [shape = 'u8[65536]{0}', space=vmem, size = 0x10000, scoped, tag = 'input window, operand 0, single buffered']
    #allocation3 [shape = 's32[1]{0}', space=sflag, size = 0x4, scoped, tag = 'scoped memory for tpu_custom_call.1']
    #allocation4 [shape = 's32[1]{0}', space=sflag, size = 0x4, scoped, tag = 'scoped memory for tpu_custom_call.1']
    #allocation5 [shape = 'u8[65536]{0}', space=vmem, size = 0x10000, scoped, tag = 'input window, operand 1, single buffered']
    #allocation6 [shape = 's32[1]{0}', space=sflag, size = 0x4, scoped, tag = 'scoped memory for tpu_custom_call.1']
    #allocation7 [shape = 'u8[65536]{0}', space=vmem, size = 0x10000, scoped, tag = 'output window, operand 0, single buffered']
    %7 = vsyncpa [#allocation3], 0
    %8 = vsyncpa [#allocation6], 0
    %9 = vsyncpa [#allocation4], 0
    // Predicated region
    $region2: #{tpu_custom_call.1} parent=1 // pred_check
      _
    $region3: #{tpu_custom_call.1} parent=1 // pred_check_branch
      %11 = sbr.rel (0) target = $region5
    $region4: #{tpu_custom_call.1} parent=1 // pred_region
      %s13 = ssub.s32 2048, 2048
      %14 = vsyncadd [#allocation3], %s13
      %s15 = sshll.u32 [#allocation2], 4
      %s16 = int_to_ptr.vmem [resolvable:$true] %s15
      %21 = dma.hbm_to_vmem [thread:$0]  %s0, 2048, %s16, [#allocation3], 128, 128, 8
    $region5: #{tpu_custom_call.1} parent=1 // pred_fallthru
      _
    // Predicated region
    $region6: #{tpu_custom_call.1} parent=1 // pred_check
      _
    $region7: #{tpu_custom_call.1} parent=1 // pred_check_branch
      %23 = sbr.rel (0) target = $region9
    $region8: #{tpu_custom_call.1} parent=1 // pred_region
      %s25 = ssub.s32 2048, 2048
      %26 = vsyncadd [#allocation6], %s25
      %s27 = sshll.u32 [#allocation5], 4
      %s28 = int_to_ptr.vmem [resolvable:$true] %s27
      %33 = dma.hbm_to_vmem [thread:$0]  %s1, 2048, %s28, [#allocation6], 128, 128, 8
    $region9: #{tpu_custom_call.1} parent=1 // pred_fallthru
      _
    // Predicated region
    $region10: #{tpu_custom_call.1} parent=1 // pred_check
      _
    $region11: #{tpu_custom_call.1} parent=1 // pred_check_branch
      %35 = sbr.rel (0) target = $region13
    $region12: #{tpu_custom_call.1} parent=1 // pred_region
      %36 = dma.done [#allocation3], 2048
    $region13: #{tpu_custom_call.1} parent=1 // pred_fallthru
      _
    // Predicated region
    $region14: #{tpu_custom_call.1} parent=1 // pred_check
      _
    $region15: #{tpu_custom_call.1} parent=1 // pred_check_branch
      %38 = sbr.rel (0) target = $region17
    $region16: #{tpu_custom_call.1} parent=1 // pred_region
      %39 = dma.done [#allocation6], 2048
    $region17: #{tpu_custom_call.1} parent=1 // pred_fallthru
      _
    %v40 = vld [vmem:[#allocation2] sm:$0xff]
    %v41 = vld [vmem:[#allocation2 + $0x8] sm:$0xff]
    %v42 = vld [vmem:[#allocation2 + $0x10] sm:$0xff]
    %v43 = vld [vmem:[#allocation2 + $0x18] sm:$0xff]
    %v44 = vld [vmem:[#allocation2 + $0x20] sm:$0xff]
    %v45 = vld [vmem:[#allocation2 + $0x28] sm:$0xff]
    %v46 = vld [vmem:[#allocation2 + $0x30] sm:$0xff]
    %v47 = vld [vmem:[#allocation2 + $0x38] sm:$0xff]
    %v48 = vld [vmem:[#allocation2 + $0x40] sm:$0xff]
    %v49 = vld [vmem:[#allocation2 + $0x48] sm:$0xff]
    %v50 = vld [vmem:[#allocation2 + $0x50] sm:$0xff]
    %v51 = vld [vmem:[#allocation2 + $0x58] sm:$0xff]
    %v52 = vld [vmem:[#allocation2 + $0x60] sm:$0xff]
    %v53 = vld [vmem:[#allocation2 + $0x68] sm:$0xff]
    %v54 = vld [vmem:[#allocation2 + $0x70] sm:$0xff]
    %v55 = vld [vmem:[#allocation2 + $0x78] sm:$0xff]
    %v56 = vld [vmem:[#allocation5] sm:$0xff]
    %v57 = vld [vmem:[#allocation5 + $0x8] sm:$0xff]
    %v58 = vld [vmem:[#allocation5 + $0x10] sm:$0xff]
    %v59 = vld [vmem:[#allocation5 + $0x18] sm:$0xff]
    %v60 = vld [vmem:[#allocation5 + $0x20] sm:$0xff]
    %v61 = vld [vmem:[#allocation5 + $0x28] sm:$0xff]
    %v62 = vld [vmem:[#allocation5 + $0x30] sm:$0xff]
    %v63 = vld [vmem:[#allocation5 + $0x38] sm:$0xff]
    %v64 = vld [vmem:[#allocation5 + $0x40] sm:$0xff]
    %v65 = vld [vmem:[#allocation5 + $0x48] sm:$0xff]
    %v66 = vld [vmem:[#allocation5 + $0x50] sm:$0xff]
    %v67 = vld [vmem:[#allocation5 + $0x58] sm:$0xff]
    %v68 = vld [vmem:[#allocation5 + $0x60] sm:$0xff]
    %v69 = vld [vmem:[#allocation5 + $0x68] sm:$0xff]
    %v70 = vld [vmem:[#allocation5 + $0x70] sm:$0xff]
    %v71 = vld [vmem:[#allocation5 + $0x78] sm:$0xff]
    %72 = vmatprep.subr.mxu0 0.0
    %73 = vmatpush1.msra.mxu0 %v56
    %74 = vmatprep.subr.mxu0 0.0
    %75 = vmatpush1.msra.mxu0 %v57
    %76 = vmatprep.subr.mxu0 0.0
    %77 = vmatpush1.msra.mxu0 %v58
    %78 = vmatprep.subr.mxu0 0.0
    %79 = vmatpush1.msra.mxu0 %v59
    %80 = vmatprep.subr.mxu0 0.0
    %81 = vmatpush1.msra.mxu0 %v60
    %82 = vmatprep.subr.mxu0 0.0
    %83 = vmatpush1.msra.mxu0 %v61
    %84 = vmatprep.subr.mxu0 0.0
    %85 = vmatpush1.msra.mxu0 %v62
    %86 = vmatprep.subr.mxu0 0.0
    %87 = vmatpush1.msra.mxu0 %v63
    %88 = vmatprep.subr.mxu0 0.0
    %89 = vmatpush1.msra.mxu0 %v64
    %90 = vmatprep.subr.mxu0 0.0
    %91 = vmatpush1.msra.mxu0 %v65
    %92 = vmatprep.subr.mxu0 0.0
    %93 = vmatpush1.msra.mxu0 %v66
    %94 = vmatprep.subr.mxu0 0.0
    %95 = vmatpush1.msra.mxu0 %v67
    %96 = vmatprep.subr.mxu0 0.0
    %97 = vmatpush1.msra.mxu0 %v68
    %98 = vmatprep.subr.mxu0 0.0
    %99 = vmatpush1.msra.mxu0 %v69
    %100 = vmatprep.subr.mxu0 0.0
    %101 = vmatpush1.msra.mxu0 %v70
    %102 = vmatprep.subr.mxu0 0.0
    %103 = vmatpush1.msra.mxu0 %v71
    %104 = vmatprep.subr.mxu0 0.0
    %105 = vmatpush1.msra.mxu0 0.0
    %106 = vmatprep.subr.mxu0 0.0
    %107 = vmatpush1.msra.mxu0 0.0
    %108 = vmatprep.subr.mxu0 0.0
    %109 = vmatpush1.msra.mxu0 0.0
    %110 = vmatprep.subr.mxu0 0.0
    %111 = vmatpush1.msra.mxu0 0.0
    %112 = vmatprep.subr.mxu0 0.0
    %113 = vmatpush1.msra.mxu0 0.0
    %114 = vmatprep.subr.mxu0 0.0
    %115 = vmatpush1.msra.mxu0 0.0
    %116 = vmatprep.subr.mxu0 0.0
    %117 = vmatpush1.msra.mxu0 0.0
    %118 = vmatprep.subr.mxu0 0.0
    %119 = vmatpush1.msra.mxu0 0.0
    %120 = vmatprep.subr.mxu0 0.0
    %121 = vmatpush1.msra.mxu0 0.0
    %122 = vmatprep.subr.mxu0 0.0
    %123 = vmatpush1.msra.mxu0 0.0
    %124 = vmatprep.subr.mxu0 0.0
    %125 = vmatpush1.msra.mxu0 0.0
    %126 = vmatprep.subr.mxu0 0.0
    %127 = vmatpush1.msra.mxu0 0.0
    %128 = vmatprep.subr.mxu0 0.0
    %129 = vmatpush1.msra.mxu0 0.0
    %130 = vmatprep.subr.mxu0 0.0
    %131 = vmatpush1.msra.mxu0 0.0
    %132 = vmatprep.subr.mxu0 0.0
    %133 = vmatpush1.msra.mxu0 0.0
    %134 = vmatprep.subr.mxu0 0.0
    %135 = vmatpush1.msra.mxu0 0.0
    %136 = vmatprep.mubr.f32.mxu0 0.0
    %137 = vmatmul.mubr.f32.gmra.mrb[0].mxu0 %v40
    %v138 = vpop.f32.mrb[0].mxu0
    %v139 = vadd.f32 0.0, %v138
    %v140 = vpop.f32.mrb[0].mxu0
    %141 = vmatprep.mubr.f32.mxu0 0.0
    %142 = vmatmul.mubr.f32.gmra.mrb[0].mxu0 %v41
    %v143 = vpop.f32.mrb[0].mxu0
    %v144 = vadd.f32 0.0, %v143
    %v145 = vpop.f32.mrb[0].mxu0
    %146 = vmatprep.mubr.f32.mxu0 0.0
    %147 = vmatmul.mubr.f32.gmra.mrb[0].mxu0 %v42
    %v148 = vpop.f32.mrb[0].mxu0
    %v149 = vadd.f32 0.0, %v148
    %v150 = vpop.f32.mrb[0].mxu0
    %151 = vmatprep.mubr.f32.mxu0 0.0
    %152 = vmatmul.mubr.f32.gmra.mrb[0].mxu0 %v43
    %v153 = vpop.f32.mrb[0].mxu0
    %v154 = vadd.f32 0.0, %v153
    %v155 = vpop.f32.mrb[0].mxu0
    %156 = vmatprep.mubr.f32.mxu0 0.0
    %157 = vmatmul.mubr.f32.gmra.mrb[0].mxu0 %v44
    %v158 = vpop.f32.mrb[0].mxu0
    %v159 = vadd.f32 0.0, %v158
    %v160 = vpop.f32.mrb[0].mxu0
    %161 = vmatprep.mubr.f32.mxu0 0.0
    %162 = vmatmul.mubr.f32.gmra.mrb[0].mxu0 %v45
    %v163 = vpop.f32.mrb[0].mxu0
    %v164 = vadd.f32 0.0, %v163
    %v165 = vpop.f32.mrb[0].mxu0
    %166 = vmatprep.mubr.f32.mxu0 0.0
    %167 = vmatmul.mubr.f32.gmra.mrb[0].mxu0 %v46
    %v168 = vpop.f32.mrb[0].mxu0
    %v169 = vadd.f32 0.0, %v168
    %v170 = vpop.f32.mrb[0].mxu0
    %171 = vmatprep.mubr.f32.mxu0 0.0
    %172 = vmatmul.mubr.f32.gmra.mrb[0].mxu0 %v47
    %v173 = vpop.f32.mrb[0].mxu0
    %v174 = vadd.f32 0.0, %v173
    %v175 = vpop.f32.mrb[0].mxu0
    %176 = vmatprep.mubr.f32.mxu0 0.0
    %177 = vmatmul.mubr.f32.gmra.mrb[0].mxu0 %v48
    %v178 = vpop.f32.mrb[0].mxu0
    %v179 = vadd.f32 0.0, %v178
    %v180 = vpop.f32.mrb[0].mxu0
    %181 = vmatprep.mubr.f32.mxu0 0.0
    %182 = vmatmul.mubr.f32.gmra.mrb[0].mxu0 %v49
    %v183 = vpop.f32.mrb[0].mxu0
    %v184 = vadd.f32 0.0, %v183
    %v185 = vpop.f32.mrb[0].mxu0
    %186 = vmatprep.mubr.f32.mxu0 0.0
    %187 = vmatmul.mubr.f32.gmra.mrb[0].mxu0 %v50
    %v188 = vpop.f32.mrb[0].mxu0
    %v189 = vadd.f32 0.0, %v188
    %v190 = vpop.f32.mrb[0].mxu0
    %191 = vmatprep.mubr.f32.mxu0 0.0
    %192 = vmatmul.mubr.f32.gmra.mrb[0].mxu0 %v51
    %v193 = vpop.f32.mrb[0].mxu0
    %v194 = vadd.f32 0.0, %v193
    %v195 = vpop.f32.mrb[0].mxu0
    %196 = vmatprep.mubr.f32.mxu0 0.0
    %197 = vmatmul.mubr.f32.gmra.mrb[0].mxu0 %v52
    %v198 = vpop.f32.mrb[0].mxu0
    %v199 = vadd.f32 0.0, %v198
    %v200 = vpop.f32.mrb[0].mxu0
    %201 = vmatprep.mubr.f32.mxu0 0.0
    %202 = vmatmul.mubr.f32.gmra.mrb[0].mxu0 %v53
    %v203 = vpop.f32.mrb[0].mxu0
    %v204 = vadd.f32 0.0, %v203
    %v205 = vpop.f32.mrb[0].mxu0
    %206 = vmatprep.mubr.f32.mxu0 0.0
    %207 = vmatmul.mubr.f32.gmra.mrb[0].mxu0 %v54
    %v208 = vpop.f32.mrb[0].mxu0
    %v209 = vadd.f32 0.0, %v208
    %v210 = vpop.f32.mrb[0].mxu0
    %211 = vmatprep.mubr.f32.mxu0 0.0
    %212 = vmatmul.mubr.f32.gmra.mrb[0].mxu0 %v55
    %v213 = vpop.f32.mrb[0].mxu0
    %v214 = vadd.f32 0.0, %v213
    %v215 = vpop.f32.mrb[0].mxu0
    %216 = vdwg.mxu0
    %217 = vst [vmem:[#allocation7] sm:$0xff] %v139
    %218 = vst [vmem:[#allocation7 + $0x8] sm:$0xff] %v144
    %219 = vst [vmem:[#allocation7 + $0x10] sm:$0xff] %v149
    %220 = vst [vmem:[#allocation7 + $0x18] sm:$0xff] %v154
    %221 = vst [vmem:[#allocation7 + $0x20] sm:$0xff] %v159
    %222 = vst [vmem:[#allocation7 + $0x28] sm:$0xff] %v164
    %223 = vst [vmem:[#allocation7 + $0x30] sm:$0xff] %v169
    %224 = vst [vmem:[#allocation7 + $0x38] sm:$0xff] %v174
    %225 = vst [vmem:[#allocation7 + $0x40] sm:$0xff] %v179
    %226 = vst [vmem:[#allocation7 + $0x48] sm:$0xff] %v184
    %227 = vst [vmem:[#allocation7 + $0x50] sm:$0xff] %v189
    %228 = vst [vmem:[#allocation7 + $0x58] sm:$0xff] %v194
    %229 = vst [vmem:[#allocation7 + $0x60] sm:$0xff] %v199
    %230 = vst [vmem:[#allocation7 + $0x68] sm:$0xff] %v204
    %231 = vst [vmem:[#allocation7 + $0x70] sm:$0xff] %v209
    %232 = vst [vmem:[#allocation7 + $0x78] sm:$0xff] %v214
    // Predicated region
    $region18: #{tpu_custom_call.1} parent=1 // pred_check
      _
    $region19: #{tpu_custom_call.1} parent=1 // pred_check_branch
      %234 = sbr.rel (0) target = $region21
    $region20: #{tpu_custom_call.1} parent=1 // pred_region
      %s236 = ssub.s32 2048, 2048
      %237 = vsyncadd [#allocation4], %s236
      %s238 = sshll.u32 [#allocation7], 4
      %s239 = int_to_ptr.vmem [resolvable:$true] %s238
      %244 = dma.vmem_to_hbm [thread:$0]  %s239, 2048, %s2, [#allocation4], 128, 128, 8
    $region21: #{tpu_custom_call.1} parent=1 // pred_fallthru
      _
    // Predicated region
    $region22: #{tpu_custom_call.1} parent=1 // pred_check
      _
    $region23: #{tpu_custom_call.1} parent=1 // pred_check_branch
      %246 = sbr.rel (0) target = $region25
    $region24: #{tpu_custom_call.1} parent=1 // pred_region
      %247 = dma.done [#allocation4], 2048
    $region25: #{tpu_custom_call.1} parent=1 // pred_fallthru
      _
    %248 = vsyncpa [#allocation3], 1
    %249 = vsyncpa [#allocation6], 1
    %250 = vsyncpa [#allocation4], 1

</llo_original>
